<compile_context>
chip_gen: v7x
topology: tpu7x:2x2x1
jax: 0.10.0
libtpu: 0.0.40
codegen_flags: <defaults>
</compile_context>

<pallas_src>
import jax
import jax.numpy as jnp
from jax.experimental import pallas as pl
from jax.experimental.pallas import tpu as pltpu

_LANES = 128
_TARGET_BLOCK_BYTES = 4 * 1024 * 1024   # per-input per-block HBM bytes
_CHUNK_ROWS = 1024                      # in-kernel accumulate chunk (<=0.5 MiB f32 temps)
_VMEM_LIMIT_BYTES = 40 * 1024 * 1024    # 16 MiB input buffers + small temps, OK on v5e/v6e/v7x
_SINGLE_BLOCK_MAX_ELEMS = 1 << 20       # ragged inputs up to 1M elems -> single-block kernel


def _round_up(n, m):
    return ((n + m - 1) // m) * m


def _make_tiled_kernel(rows, row_tile, chunk_rows, acc_rows,
                       total_blocks, blocks_per_slice,
                       needs_row_mask, has_overflow):
    num_chunks = row_tile // chunk_rows

    def kernel(x_ref, y_ref, out_ref, acc_ref):
        k = pl.program_id(1)
        block_idx = pl.program_id(0) * blocks_per_slice + k

        @pl.when(k == 0)
        def _():
            acc_ref[...] = jnp.zeros_like(acc_ref)

        def add_chunk(r0, masked):
            xs = x_ref[pl.ds(r0, chunk_rows), :].astype(jnp.float32)
            ys = y_ref[pl.ds(r0, chunk_rows), :].astype(jnp.float32)
            absd = jnp.abs(xs - ys)
            if masked:
                # Zero the garbage rows of the overhanging edge block.
                row_ids = (block_idx * row_tile + r0 +
                           jax.lax.broadcasted_iota(
                               jnp.int32, (chunk_rows, _LANES), 0))
                absd = jnp.where(row_ids < rows, absd, 0.0)
            # Lane/sublane-parallel partial sums: pure VPU adds, acc stays
            # resident in VMEM across the whole grid slice.
            acc_ref[...] += jnp.sum(
                absd.reshape(chunk_rows // acc_rows, acc_rows, _LANES), axis=0)

        def accumulate_block(masked):
            if num_chunks == 1:
                add_chunk(0, masked)
            else:
                def body(c, carry):
                    add_chunk(pl.multiple_of(c * chunk_rows, chunk_rows),
                              masked)
                    return carry
                jax.lax.fori_loop(0, num_chunks, body, 0)

        if needs_row_mask:
            # Interior blocks: plain sub/abs/add (no iota/compare/select tax).
            @pl.when(block_idx < total_blocks - 1)
            def _():
                accumulate_block(False)

            # Only the true edge block pays the row mask; an overflow step
            # (block_idx == total_blocks) matches neither predicate -> skipped.
            @pl.when(block_idx == total_blocks - 1)
            def _():
                accumulate_block(True)
        elif has_overflow:
            @pl.when(block_idx < total_blocks)
            def _():
                accumulate_block(False)
        else:
            accumulate_block(False)

        # Single cross-lane/cross-sublane reduction, once per slice.
        @pl.when(k == pl.num_programs(1) - 1)
        def _():
            out_ref[...] = jnp.sum(acc_ref[...]).reshape(1, 1)

    return kernel


def _sum_abs_diff_tiled(x2, y2, rows):
    """Sum |x - y| over a (rows, 128) view; rows beyond `rows` are masked."""
    itemsize = jnp.dtype(x2.dtype).itemsize
    row_mult = max(8, 32 // itemsize)                      # native sublane packing
    max_row_tile = max(row_mult, _TARGET_BLOCK_BYTES // (_LANES * itemsize))
    row_tile = min(max_row_tile, _round_up(rows, row_mult))

    chunk_rows = _CHUNK_ROWS if row_tile % _CHUNK_ROWS == 0 else row_tile
    acc_rows = next(a for a in (64, 32, 16, 8) if chunk_rows % a == 0)

    total_blocks = pl.cdiv(rows, row_tile)
    # Leading "parallel" axis lets v7x megacore split row blocks across its
    # two TensorCores (harmless serial outer loop on single-TC v5e/v6e).
    num_slices = 2 if total_blocks >= 2 else 1
    blocks_per_slice = pl.cdiv(total_blocks, num_slices)
    has_overflow = num_slices * blocks_per_slice > total_blocks
    needs_row_mask = (rows % row_tile) != 0

    if has_overflow:
        # Clamp the (single) overflow step to the previous block of the same
        # slice: the block index repeats, so Pallas skips the re-fetch and the
        # kernel skips the accumulation -> no duplicate HBM read, no double
        # count.
        def in_index(s, k):
            return (jnp.minimum(s * blocks_per_slice + k, total_blocks - 1), 0)
    else:
        def in_index(s, k):
            return (s * blocks_per_slice + k, 0)

    kernel = _make_tiled_kernel(rows, row_tile, chunk_rows, acc_rows,
                                total_blocks, blocks_per_slice,
                                needs_row_mask, has_overflow)

    n_elems = rows * _LANES
    cost = pl.CostEstimate(flops=3 * n_elems, transcendentals=0,
                           bytes_accessed=2 * n_elems * itemsize + 8)

    partial = pl.pallas_call(
        kernel,
        out_shape=jax.ShapeDtypeStruct((num_slices, 1), jnp.float32),
        grid_spec=pltpu.PrefetchScalarGridSpec(
            num_scalar_prefetch=0,
            grid=(num_slices, blocks_per_slice),
            in_specs=[
                pl.BlockSpec((row_tile, _LANES), in_index),
                pl.BlockSpec((row_tile, _LANES), in_index),
            ],
            out_specs=pl.BlockSpec((1, 1), lambda s, k: (s, 0)),
            scratch_shapes=[pltpu.VMEM((acc_rows, _LANES), jnp.float32)],
        ),
        compiler_params=pltpu.CompilerParams(
            dimension_semantics=("parallel", "arbitrary"),
            vmem_limit_bytes=_VMEM_LIMIT_BYTES,
        ),
        cost_estimate=cost,
    )(x2, y2)
    return jnp.sum(partial)


def _whole_array_kernel(x_ref, y_ref, out_ref):
    diff = x_ref[...].astype(jnp.float32) - y_ref[...].astype(jnp.float32)
    out_ref[...] = jnp.sum(jnp.abs(diff)).reshape(1, 1)


def _sum_abs_diff_single_block(x_flat, y_flat):
    """Zero-copy path for small ragged tensors (size % 128 != 0)."""
    n = x_flat.shape[0]
    partial = pl.pallas_call(
        _whole_array_kernel,
        out_shape=jax.ShapeDtypeStruct((1, 1), jnp.float32),
    )(x_flat.reshape(1, n), y_flat.reshape(1, n))
    return partial[0, 0]


def l1_loss(inputs, targets):
    """Mean absolute error, equivalent to nn.L1Loss(reduction='mean')."""
    assert inputs.shape == targets.shape, (inputs.shape, targets.shape)
    n_elems = int(inputs.size)
    if n_elems == 0:
        # PyTorch returns NaN for empty inputs (0 / 0).
        return jnp.array(float("nan"), dtype=inputs.dtype)

    x = inputs.reshape(-1)   # free (bitcast) in XLA
    y = targets.reshape(-1)
    tail = n_elems % _LANES

    if tail == 0:
        rows = n_elems // _LANES
        total = _sum_abs_diff_tiled(x.reshape(rows, _LANES),
                                    y.reshape(rows, _LANES), rows)
    elif n_elems <= _SINGLE_BLOCK_MAX_ELEMS:
        total = _sum_abs_diff_single_block(x, y)
    else:
        # TODO(synk): huge ragged inputs (size % 128 != 0 and > 1M elements)
        # still pay one extra HBM pass for the 128-lane zero pad; both arrays
        # get identical zero padding so padded entries contribute 0.
        pad = _LANES - tail
        x = jnp.pad(x, (0, pad))
        y = jnp.pad(y, (0, pad))
        rows = (n_elems + pad) // _LANES
        total = _sum_abs_diff_tiled(x.reshape(rows, _LANES),
                                    y.reshape(rows, _LANES), rows)

    # f32 division: for n_elems > 2^24 the count rounds in f32 (~1e-7 rel err).
    return (total / jnp.float32(n_elems)).astype(inputs.dtype)


if __name__ == "__main__":
    key = jax.random.PRNGKey(0)
    k1, k2, k3, k4, k5, k6, k7, k8 = jax.random.split(key, 8)

    # 1) Primary case: NCHW shape implied by the module (batch=2, channels=4, 16x16).
    shape = (2, 4, 16, 16)
    a = jax.random.normal(k1, shape, dtype=jnp.float32)
    b = jax.random.normal(k2, shape, dtype=jnp.float32)
    loss = l1_loss(a, b)
    jax.block_until_ready(loss)
    ref = jnp.mean(jnp.abs(a - b))
    assert jnp.allclose(loss, ref, rtol=1e-6, atol=1e-6), (loss, ref)

    # 2) Small ragged case (size % 128 != 0): zero-copy single-block path.
    shape2 = (3, 5, 7, 11)
    a2 = jax.random.normal(k3, shape2, dtype=jnp.float32)
    b2 = jax.random.normal(k4, shape2, dtype=jnp.float32)
    loss2 = l1_loss(a2, b2)
    jax.block_until_ready(loss2)
    ref2 = jnp.mean(jnp.abs(a2 - b2))
    assert jnp.allclose(loss2, ref2, rtol=1e-6, atol=1e-6), (loss2, ref2)

    # 3) Tiny divisible case with rows < 8: exercises edge-block overhang + row mask.
    shape3 = (2, 3, 128)
    a3 = jax.random.normal(k5, shape3, dtype=jnp.float32)
    b3 = jax.random.normal(k6, shape3, dtype=jnp.float32)
    loss3 = l1_loss(a3, b3)
    jax.block_until_ready(loss3)
    ref3 = jnp.mean(jnp.abs(a3 - b3))
    assert jnp.allclose(loss3, ref3, rtol=1e-6, atol=1e-6), (loss3, ref3)

    # 4) Multi-block case: odd block count (megacore split + clamped overflow
    #    step) + ragged edge block + chunked fori_loop accumulate.
    shape4 = (3 * 8192 - 100, 128)
    a4 = jax.random.normal(k7, shape4, dtype=jnp.float32)
    b4 = jax.random.normal(k8, shape4, dtype=jnp.float32)
    loss4 = l1_loss(a4, b4)
    jax.block_until_ready(loss4)
    ref4 = jnp.mean(jnp.abs(a4 - b4))
    assert jnp.allclose(loss4, ref4, rtol=1e-5, atol=1e-6), (loss4, ref4)

    # 5) bf16 inputs: exercises 16-row sublane packing + f32 accumulation.
    a5 = a.astype(jnp.bfloat16)
    b5 = b.astype(jnp.bfloat16)
    loss5 = l1_loss(a5, b5)
    jax.block_until_ready(loss5)
    ref5 = jnp.mean(jnp.abs(a5.astype(jnp.float32) - b5.astype(jnp.float32)))
    assert jnp.allclose(loss5.astype(jnp.float32), ref5, rtol=1e-2, atol=1e-2), (
        loss5, ref5)

    print("KERNEL_OK")
</pallas_src>

<mosaic_0001>
module attributes {stable_mosaic.version = 11 : i64} {
  func.func @kernel(%arg0: i32, %arg1: i32, %arg2: memref<16x128xf32, #tpu.memory_space<vmem>>, %arg3: memref<16x128xf32, #tpu.memory_space<vmem>>, %arg4: memref<1x1xf32, #tpu.memory_space<vmem>>, %arg5: memref<16x128xf32, #tpu.memory_space<vmem>>) attributes {dimension_semantics = [#tpu.dimension_semantics<parallel>, #tpu.dimension_semantics<arbitrary>], iteration_bounds = array<i64: 1, 1>, scalar_prefetch = 0 : i64, scratch_operands = 1 : i64, tpu.core_type = #tpu.core_type<tc>, window_params = [{transform_indices = @transform_0, window_bounds = array<i64: 16, 128>}, {transform_indices = @transform_1, window_bounds = array<i64: 16, 128>}, {transform_indices = @transform_2, window_bounds = array<i64: 1, 1>}]} {
    %c0_i32 = arith.constant 0 : i32
    %0 = arith.cmpi eq, %arg1, %c0_i32 : i32
    %1 = arith.extui %0 : i1 to i32
    %c0_i32_0 = arith.constant 0 : i32
    %2 = arith.cmpi ne, %1, %c0_i32_0 : i32
    scf.if %2 {
      %cst_10 = arith.constant 0.000000e+00 : f32
      %15 = vector.broadcast %cst_10 : f32 to vector<16x128xf32>
      %c0_11 = arith.constant 0 : index
      %c0_12 = arith.constant 0 : index
      %16 = vector.load %arg5[%c0_11, %c0_12] : memref<16x128xf32, #tpu.memory_space<vmem>>, vector<16x128xf32>
      tpu.vector_store %arg5[%c0_11, %c0_12], %15 {strides = array<i32>} : memref<16x128xf32, #tpu.memory_space<vmem>>, vector<16x128xf32>,
    } else {
    }
    %c0 = arith.constant 0 : index
    %c0_1 = arith.constant 0 : index
    %3 = vector.load %arg2[%c0, %c0_1] : memref<16x128xf32, #tpu.memory_space<vmem>>, vector<16x128xf32>
    %c0_2 = arith.constant 0 : index
    %c0_3 = arith.constant 0 : index
    %4 = vector.load %arg3[%c0_2, %c0_3] : memref<16x128xf32, #tpu.memory_space<vmem>>, vector<16x128xf32>
    %5 = arith.subf %3, %4 : vector<16x128xf32>
    %6 = math.absf %5 : vector<16x128xf32>
    %c0_4 = arith.constant 0 : index
    %c0_5 = arith.constant 0 : index
    %7 = vector.load %arg5[%c0_4, %c0_5] : memref<16x128xf32, #tpu.memory_space<vmem>>, vector<16x128xf32>
    %8 = vector.shape_cast %6 : vector<16x128xf32> to vector<1x16x128xf32>
    %cst = arith.constant dense<0.000000e+00> : vector<16x128xf32>
    %9 = vector.multi_reduction <add>, %8, %cst [0] : vector<1x16x128xf32> to vector<16x128xf32>
    %10 = arith.addf %7, %9 : vector<16x128xf32>
    %c0_6 = arith.constant 0 : index
    %c0_7 = arith.constant 0 : index
    %11 = vector.load %arg5[%c0_6, %c0_7] : memref<16x128xf32, #tpu.memory_space<vmem>>, vector<16x128xf32>
    tpu.vector_store %arg5[%c0_6, %c0_7], %10 {strides = array<i32>} : memref<16x128xf32, #tpu.memory_space<vmem>>, vector<16x128xf32>,
    %c0_i32_8 = arith.constant 0 : i32
    %12 = arith.cmpi eq, %arg1, %c0_i32_8 : i32
    %13 = arith.extui %12 : i1 to i32
    %c0_i32_9 = arith.constant 0 : i32
    %14 = arith.cmpi ne, %13, %c0_i32_9 : i32
    scf.if %14 {
      %c0_10 = arith.constant 0 : index
      %c0_11 = arith.constant 0 : index
      %15 = vector.load %arg5[%c0_10, %c0_11] : memref<16x128xf32, #tpu.memory_space<vmem>>, vector<16x128xf32>
      %16 = vector.shape_cast %15 : vector<16x128xf32> to vector<1x16x128xf32>
      %cst_12 = arith.constant dense<0.000000e+00> : vector<1xf32>
      %17 = vector.multi_reduction <add>, %16, %cst_12 [1, 2] : vector<1x16x128xf32> to vector<1xf32>
      %18 = vector.shape_cast %17 : vector<1xf32> to vector<1x1x1xf32>
      %19 = vector.extract %18[0, 0, 0] : f32 from vector<1x1x1xf32>
      %20 = vector.broadcast %19 : f32 to vector<1x1xf32>
      %c0_13 = arith.constant 0 : index
      %c0_14 = arith.constant 0 : index
      %21 = vector.load %arg4[%c0_13, %c0_14] : memref<1x1xf32, #tpu.memory_space<vmem>>, vector<1x1xf32>
      tpu.vector_store %arg4[%c0_13, %c0_14], %20 {strides = array<i32>} : memref<1x1xf32, #tpu.memory_space<vmem>>, vector<1x1xf32>,
    } else {
    }
    return
  }
  func.func @transform_0(%arg0: i32, %arg1: i32) -> (i32, i32) {
    %c1_i32 = arith.constant 1 : i32
    %0 = arith.muli %arg0, %c1_i32 : i32
    %1 = arith.addi %0, %arg1 : i32
    %c0_i32 = arith.constant 0 : i32
    %c0_i32_0 = arith.constant 0 : i32
    return %1, %c0_i32 : i32, i32
  }
  func.func @transform_1(%arg0: i32, %arg1: i32) -> (i32, i32) {
    %c1_i32 = arith.constant 1 : i32
    %0 = arith.muli %arg0, %c1_i32 : i32
    %1 = arith.addi %0, %arg1 : i32
    %c0_i32 = arith.constant 0 : i32
    %c0_i32_0 = arith.constant 0 : i32
    return %1, %c0_i32 : i32, i32
  }
  func.func @transform_2(%arg0: i32, %arg1: i32) -> (i32, i32) {
    %c0_i32 = arith.constant 0 : i32
    %c0_i32_0 = arith.constant 0 : i32
    return %arg0, %c0_i32 : i32, i32
  }
}

</mosaic_0001>

<llo_original>
// kernel: tpu_custom_call.1
$region0: #{tpu_custom_call.1}
  #allocation0 [shape = 'u32[]', space=smem, size = 0x4, offset = 0x4, fixed_abs, tag = 'smem constant byte address 0x4 - core index']
  #allocation1 [shape = 'u32[144,128]{1,0:T(1,128)}', space=vmem, size = 0x12000, scoped, tag = 'internal scratch']
  #allocation2 [shape = 'f32[16,128]{1,0:T(8,128)}', space=vmem, size = 0x2000, scoped, tag = 'scratch operand']
  %s0 = inlined_call_operand.hbm [shape: f32[16,128], index: 0, kind: input, shape index: {}]
  %s1 = inlined_call_operand.hbm [shape: f32[16,128], index: 1, kind: input, shape index: {}]
  %s2 = inlined_call_operand.hbm [shape: f32[1,1], index: 2, kind: output, shape index: {}]
  %s3 = sld [smem:[#allocation0]]
  $region34: #{tpu_custom_call.1} parent=0
    _
  %s5 = ssub.s32 1, %s3
  %s6 = scalar_select 0, %s5, %s3
  $region1: #{tpu_custom_call.1} parent=0
    #allocation3 [shape = 'u8[8192]{0}', space=vmem, size = 0x2000, scoped, tag = 'input window, operand 0, single buffered']
    #allocation4 [shape = 's32[1]{0}', space=sflag, size = 0x4, scoped, tag = 'scoped memory for tpu_custom_call.1']
    #allocation5 [shape = 's32[1]{0}', space=sflag, size = 0x4, scoped, tag = 'scoped memory for tpu_custom_call.1']
    #allocation6 [shape = 'u8[8192]{0}', space=vmem, size = 0x2000, scoped, tag = 'input window, operand 1, single buffered']
    #allocation7 [shape = 's32[1]{0}', space=sflag, size = 0x4, scoped, tag = 'scoped memory for tpu_custom_call.1']
    #allocation8 [shape = 'u8[512]{0}', space=vmem, size = 0x400, scoped, tag = 'output window, operand 0, single buffered']
    %7 = vsyncpa [#allocation4], 0
    %8 = vsyncpa [#allocation7], 0
    %9 = vsyncpa [#allocation5], 0
    // Predicated region
    $region2: #{tpu_custom_call.1} parent=1 // pred_check
      _
    $region3: #{tpu_custom_call.1} parent=1 // pred_check_branch
      %11 = sbr.rel (0) target = $region5
    $region4: #{tpu_custom_call.1} parent=1 // pred_region
      %s12 = sadd.s32 0, 0
      %s13 = smul.u32 2, %s12
      %s15 = ssub.s32 256, 256
      %16 = vsyncadd [#allocation4], %s15
      %s17 = smul.addr %s13, 128
      %s18 = scalar_lea.hbm %s0, %s17
      %s19 = sshll.u32 [#allocation3], 4
      %s20 = int_to_ptr.vmem [resolvable:$true] %s19
      %25 = dma.hbm_to_vmem [thread:$0]  %s18, 256, %s20, [#allocation4], 128, 128, 8
    $region5: #{tpu_custom_call.1} parent=1 // pred_fallthru
      _
    // Predicated region
    $region6: #{tpu_custom_call.1} parent=1 // pred_check
      _
    $region7: #{tpu_custom_call.1} parent=1 // pred_check_branch
      %27 = sbr.rel (0) target = $region9
    $region8: #{tpu_custom_call.1} parent=1 // pred_region
      %s28 = sadd.s32 0, 0
      %s29 = smul.u32 2, %s28
      %s31 = ssub.s32 256, 256
      %32 = vsyncadd [#allocation7], %s31
      %s33 = smul.addr %s29, 128
      %s34 = scalar_lea.hbm %s1, %s33
      %s35 = sshll.u32 [#allocation6], 4
      %s36 = int_to_ptr.vmem [resolvable:$true] %s35
      %41 = dma.hbm_to_vmem [thread:$0]  %s34, 256, %s36, [#allocation7], 128, 128, 8
    $region9: #{tpu_custom_call.1} parent=1 // pred_fallthru
      _
    // Predicated region
    $region10: #{tpu_custom_call.1} parent=1 // pred_check
      _
    $region11: #{tpu_custom_call.1} parent=1 // pred_check_branch
      %43 = sbr.rel (0) target = $region13
    $region12: #{tpu_custom_call.1} parent=1 // pred_region
      %44 = dma.done [#allocation4], 256
    $region13: #{tpu_custom_call.1} parent=1 // pred_fallthru
      _
    // Predicated region
    $region14: #{tpu_custom_call.1} parent=1 // pred_check
      _
    $region15: #{tpu_custom_call.1} parent=1 // pred_check_branch
      %46 = sbr.rel (0) target = $region17
    $region16: #{tpu_custom_call.1} parent=1 // pred_region
      %47 = dma.done [#allocation7], 256
    $region17: #{tpu_custom_call.1} parent=1 // pred_fallthru
      _
    %s48 = sadd.s32 0, 0
    %s49 = smul.u32 2, %s48
    %s50 = sadd.s32 0, 0
    %s51 = smul.u32 2, %s50
    %p52 = scmp.eq.s32.totalorder 0, 0
    // Predicated region
    $region18: #{tpu_custom_call.1} parent=1 // pred_check
      %p53 = pneg %p52
    $region19: #{tpu_custom_call.1} parent=1 // pred_check_branch
      %55 = sbr.rel (%p53) target = $region21
    $region20: #{tpu_custom_call.1} parent=1 // pred_region
      %56 = vst [vmem:[#allocation2] sm:$0xff] 0.0
      %57 = vst [vmem:[#allocation2 + $0x8] sm:$0xff] 0.0
    $region21: #{tpu_custom_call.1} parent=1 // pred_fallthru
      _
    %v58 = vld [vmem:[#allocation3] sm:$0xff]
    %v59 = vld [vmem:[#allocation3 + $0x8] sm:$0xff]
    %v60 = vld [vmem:[#allocation6] sm:$0xff]
    %v61 = vld [vmem:[#allocation6 + $0x8] sm:$0xff]
    %v62 = vsub.f32 %v58, %v60
    %v63 = vsub.f32 %v59, %v61
    %v64 = vand.u32 2147483647, %v62
    %v65 = vand.u32 2147483647, %v63
    %v66 = vld [vmem:[#allocation2] sm:$0xff]
    %v67 = vld [vmem:[#allocation2 + $0x8] sm:$0xff]
    %v68 = vadd.f32 %v64, 0.0
    %v69 = vadd.f32 %v65, 0.0
    %v70 = vadd.f32 %v66, %v68
    %v71 = vadd.f32 %v67, %v69
    %72 = vst [vmem:[#allocation2] sm:$0xff] %v70
    %73 = vst [vmem:[#allocation2 + $0x8] sm:$0xff] %v71
    // Predicated region
    $region22: #{tpu_custom_call.1} parent=1 // pred_check
      %p74 = pneg %p52
    $region23: #{tpu_custom_call.1} parent=1 // pred_check_branch
      %76 = sbr.rel (%p74) target = $region25
    $region24: #{tpu_custom_call.1} parent=1 // pred_region
      %v77 = vld [vmem:[#allocation2] sm:$0xff]
      %v78 = vld [vmem:[#allocation2 + $0x8] sm:$0xff]
      %v79 = vadd.f32 %v77, %v78
      %80 = vadd.xlane.f32.xlu0 %v79
      %v81 = vpop.xlane.xlu0 %80
      %v82 = vrot.slane %v81, 4
      %v83 = vadd.f32 %v81, %v82
      %v84 = vrot.slane %v83, 2
      %v85 = vadd.f32 %v83, %v84
      %v86 = vrot.slane %v85, 1
      %v87 = vadd.f32 %v85, %v86
      %s88 = vtos %v87
      %v89 = vstv %s88
      %vm90 = vcmask 0
      %91 = vst.msk [vmem:[#allocation8] sm:$0x1] %vm90, %v89
    $region25: #{tpu_custom_call.1} parent=1 // pred_fallthru
      _
    // Predicated region
    $region26: #{tpu_custom_call.1} parent=1 // pred_check
      _
    $region27: #{tpu_custom_call.1} parent=1 // pred_check_branch
      %93 = sbr.rel (0) target = $region29
    $region28: #{tpu_custom_call.1} parent=1 // pred_region
      %s95 = ssub.s32 16, 16
      %96 = vsyncadd [#allocation5], %s95
      %s98 = sshll.u32 [#allocation8], 4
      %s99 = int_to_ptr.vmem [resolvable:$true] %s98
      %101 = dma.vmem_to_hbm [thread:$0]  %s99, 16, %s2, [#allocation5]
    $region29: #{tpu_custom_call.1} parent=1 // pred_fallthru
      _
    // Predicated region
    $region30: #{tpu_custom_call.1} parent=1 // pred_check
      _
    $region31: #{tpu_custom_call.1} parent=1 // pred_check_branch
      %103 = sbr.rel (0) target = $region33
    $region32: #{tpu_custom_call.1} parent=1 // pred_region
      %104 = dma.done [#allocation5], 16
    $region33: #{tpu_custom_call.1} parent=1 // pred_fallthru
      _
    %105 = vsyncpa [#allocation4], 1
    %106 = vsyncpa [#allocation7], 1
    %107 = vsyncpa [#allocation5], 1

</llo_original>
